<compile_context>
chip_gen: v5e
topology: v5e:2x2
jax: 0.10.0
libtpu: 0.0.40
codegen_flags: <defaults>
</compile_context>

<pallas_src>
import functools
from typing import NamedTuple

import jax
import jax.numpy as jnp
from jax.experimental import pallas as pl
from jax.experimental.pallas import tpu as pltpu


def _round_up(v, m):
    return (v + m - 1) // m * m


def _vmem_capacity_bytes():
    """Physical VMEM per core; conservative (v7x-sized) fallback if unqueryable."""
    try:
        info = pltpu.get_tpu_info()
        cap = getattr(info, "vmem_capacity_bytes", None)
        if cap:
            return int(cap)
    except Exception:
        pass
    return 64 << 20


def _block_footprint_bytes(bm, hn, k_pad, mm_bytes, w_bufs):
    """VMEM bytes for one grid step, counting everything that gets buffered."""
    act = bm * k_pad * mm_bytes * 2               # [x | h] block, double-buffered
    weight = k_pad * 4 * hn * mm_bytes * w_bufs   # W_cat block
    c_prev = bm * hn * 4 * 2                      # c_prev block, double-buffered
    outs = 2 * bm * hn * 4 * 2                    # h_out + c_out, double-buffered
    bias = 8 * 4 * hn * 4 * 2                     # bias (padded to 8 sublanes)
    interm = 2 * bm * 4 * hn * 4                  # f32 gates + elementwise temps
    return act + weight + c_prev + outs + bias + interm


class LSTMCellConfig(NamedTuple):
    input_size: int
    hidden_size: int
    i_pad: int
    h_pad: int
    k_pad: int
    hn: int
    n_chunks: int
    bm_cap: int
    matmul_dtype: str
    vmem_limit: int
    block_budget: int


# --------------------------------------------------------------------------
# Kernel
# --------------------------------------------------------------------------
def lstm_cell_kernel(xh_ref, c_ref, w_ref, b_ref, h_out_ref, c_out_ref):
    """One (hidden-chunk, batch-tile) block of the fused LSTM cell."""
    hn = c_ref.shape[-1]                       # hidden-chunk width (mult. of 128)

    # Single MXU contraction over the full concatenated K, f32 accumulation.
    gates = jnp.dot(xh_ref[...], w_ref[...],
                    preferred_element_type=jnp.float32) + b_ref[...]

    # sigmoid(x) == 0.5 * tanh(0.5 * x) + 0.5  -> one EUP push per element.
    ifo = 0.5 * jnp.tanh(0.5 * gates[:, :3 * hn]) + 0.5
    i = ifo[:, 0 * hn:1 * hn]
    f = ifo[:, 1 * hn:2 * hn]
    o = ifo[:, 2 * hn:3 * hn]
    g = jnp.tanh(gates[:, 3 * hn:4 * hn])

    c = f * c_ref[...].astype(jnp.float32) + i * g
    h = o * jnp.tanh(c)

    h_out_ref[...] = h.astype(h_out_ref.dtype)
    c_out_ref[...] = c.astype(c_out_ref.dtype)


# --------------------------------------------------------------------------
# One-time weight packing (hoisted out of the per-step call)
# --------------------------------------------------------------------------
def pack_params(wx, wh, b, *, matmul_dtype=jnp.float32, max_batch_tile=None):
    """Pad + repack the fused LSTM weights once; cache the results.

    wx: [I, 4H], wh: [H, 4H], b: [1, 4H] (gate column order i | f | o | g).
    Returns (wcat_packed [(I_pad+H_pad), 4*H_pad], bias_packed [1, 4*H_pad], cfg).
    """
    I, four_h = wx.shape
    H = wh.shape[0]
    assert four_h == 4 * H and wh.shape[1] == 4 * H

    i_pad = _round_up(I, 128)
    h_pad = _round_up(H, 128)
    k_pad = i_pad + h_pad

    mm_dtype = jnp.dtype(matmul_dtype)
    mm_bytes = mm_dtype.itemsize

    # Generation-aware budgets: use what the part actually has (128 MiB on
    # v5e/v6e, 64 MiB per core on v7x), leave headroom for the compiler.
    cap = _vmem_capacity_bytes()
    vmem_limit = min(cap * 3 // 4, 100 << 20)
    block_budget = vmem_limit - (4 << 20)
    if max_batch_tile is None:
        bm_cap = 512 if cap >= (96 << 20) else 256
    else:
        bm_cap = max(8, _round_up(max_batch_tile, 8))

    # Largest lane-dense hidden-chunk width whose *full* footprint fits.
    hn = 128  # TODO(synk): K-tile the contraction if even 128 overflows VMEM.
    for cand in (512, 256, 128):
        if (cand <= h_pad and h_pad % cand == 0 and
                _block_footprint_bytes(bm_cap, cand, k_pad, mm_bytes, 2)
                <= block_budget):
            hn = cand
            break
    n_chunks = h_pad // hn

    # Rows: [wx ; 0 ; wh ; 0] so they line up with the padded [x | h] block.
    wxp = jnp.pad(jnp.asarray(wx), ((0, i_pad - I), (0, 0)))
    whp = jnp.pad(jnp.asarray(wh), ((0, h_pad - H), (0, 0)))
    wcat = jnp.concatenate([wxp, whp], axis=0)                 # (k_pad, 4H)

    # Columns: widen each gate H -> h_pad with zeros, then regroup so hidden
    # chunk n is contiguous [i_n | f_n | o_n | g_n] -> lane-aligned slices.
    w4 = jnp.pad(wcat.reshape(k_pad, 4, H), ((0, 0), (0, 0), (0, h_pad - H)))
    w4 = w4.reshape(k_pad, 4, n_chunks, hn).transpose(0, 2, 1, 3)
    wcat_p = w4.reshape(k_pad, 4 * h_pad).astype(mm_dtype)

    b4 = jnp.pad(jnp.asarray(b).reshape(4, H), ((0, 0), (0, h_pad - H)))
    b_p = (b4.reshape(4, n_chunks, hn).transpose(1, 0, 2)
           .reshape(1, 4 * h_pad).astype(jnp.float32))

    cfg = LSTMCellConfig(I, H, i_pad, h_pad, k_pad, hn, n_chunks, bm_cap,
                         mm_dtype.name, int(vmem_limit), int(block_budget))
    return wcat_p, b_p, cfg


def _pick_bm(batch, cfg):
    """Batch tile: minimize padding, prefer the largest among ties, fit VMEM."""
    mm_bytes = jnp.dtype(cfg.matmul_dtype).itemsize
    cands = [c for c in (512, 256, 128, 64, 32, 16, 8) if c <= cfg.bm_cap]
    bm = min(cands, key=lambda c: (_round_up(batch, c) - batch, -c))
    while bm > 8 and _block_footprint_bytes(
            bm, cfg.hn, cfg.k_pad, mm_bytes, 2) > cfg.block_budget:
        bm //= 2
    return bm


# --------------------------------------------------------------------------
# Per-step wrapper
# --------------------------------------------------------------------------
@functools.partial(jax.jit, static_argnames=("cfg",))
def lstm_cell(x, h_prev, c_prev, wcat_p, b_p, cfg):
    """One LSTM cell step.  x:[B,I], h_prev/c_prev:[B,H] -> (h, c):[B,H]."""
    B, I = x.shape
    H = h_prev.shape[-1]
    assert I == cfg.input_size and H == cfg.hidden_size
    mm_dtype = jnp.dtype(cfg.matmul_dtype)

    bm = _pick_bm(B, cfg)
    b_pad = _round_up(B, bm)
    m_tiles = b_pad // bm

    # Activations: pad + concatenate per step (cheap; weights are prepacked).
    xh = jnp.concatenate(
        [jnp.pad(x, ((0, b_pad - B), (0, cfg.i_pad - I))),
         jnp.pad(h_prev, ((0, b_pad - B), (0, cfg.h_pad - H)))],
        axis=-1).astype(mm_dtype)                            # (b_pad, k_pad)
    cp = jnp.pad(c_prev, ((0, b_pad - B), (0, cfg.h_pad - H)))

    # Weight block index is constant along the inner batch axis; with several
    # batch tiles one buffer suffices (one exposed reload per chunk switch).
    if m_tiles > 1:
        w_spec = pl.BlockSpec((cfg.k_pad, 4 * cfg.hn), lambda n, m: (0, n),
                              pipeline_mode=pl.Buffered(buffer_count=1))
    else:
        w_spec = pl.BlockSpec((cfg.k_pad, 4 * cfg.hn), lambda n, m: (0, n))

    # Megacore: split on the hidden-chunk axis when possible so each core
    # streams a disjoint half of the weight columns (no duplicated weight DMA).
    if cfg.n_chunks >= 2:
        dims = ("parallel", "arbitrary")
    else:
        dims = ("parallel", "parallel")

    h_out, c_out = pl.pallas_call(
        lstm_cell_kernel,
        out_shape=(jax.ShapeDtypeStruct((b_pad, cfg.h_pad), h_prev.dtype),
                   jax.ShapeDtypeStruct((b_pad, cfg.h_pad), c_prev.dtype)),
        grid_spec=pltpu.PrefetchScalarGridSpec(
            num_scalar_prefetch=0,
            # Batch is the inner axis so the weight block stays resident while
            # batch tiles stream past it.
            grid=(cfg.n_chunks, m_tiles),
            in_specs=[
                pl.BlockSpec((bm, cfg.k_pad), lambda n, m: (m, 0)),   # [x | h]
                pl.BlockSpec((bm, cfg.hn), lambda n, m: (m, n)),      # c_prev
                w_spec,                                               # W_cat
                pl.BlockSpec((1, 4 * cfg.hn), lambda n, m: (0, n)),   # bias
            ],
            out_specs=(
                pl.BlockSpec((bm, cfg.hn), lambda n, m: (m, n)),      # h
                pl.BlockSpec((bm, cfg.hn), lambda n, m: (m, n)),      # c
            ),
        ),
        # Padded c_prev temporary aliases c_out: no extra HBM write-allocate.
        input_output_aliases={1: 1},
        compiler_params=pltpu.CompilerParams(
            dimension_semantics=dims,
            vmem_limit_bytes=cfg.vmem_limit,
        ),
    )(xh, cp, wcat_p, b_p)

    return h_out[:B, :H], c_out[:B, :H]


# --------------------------------------------------------------------------
# Reference / init / demo
# --------------------------------------------------------------------------
def lstm_cell_ref(x, h_prev, c_prev, wx, wh, b):
    """Pure-JAX f32 reference mirroring the PyTorch forward."""
    combined = jnp.concatenate([x, h_prev], axis=-1)
    gates = combined @ jnp.concatenate([wx, wh], axis=0) + b.reshape(1, -1)
    H = h_prev.shape[-1]
    i = jax.nn.sigmoid(gates[:, 0 * H:1 * H])
    f = jax.nn.sigmoid(gates[:, 1 * H:2 * H])
    o = jax.nn.sigmoid(gates[:, 2 * H:3 * H])
    g = jnp.tanh(gates[:, 3 * H:4 * H])
    c = f * c_prev + i * g
    h = o * jnp.tanh(c)
    return h, c


def init_params(key, input_size, hidden_size, dtype=jnp.float32):
    """nn.Linear-style init (U(+/- 1/sqrt(fan_in))), gate columns i|f|o|g."""
    fan_in = input_size + hidden_size
    bound = 1.0 / float(fan_in) ** 0.5
    k_w, k_b = jax.random.split(key)
    w_cat = jax.random.uniform(k_w, (fan_in, 4 * hidden_size),
                               minval=-bound, maxval=bound, dtype=dtype)
    b = jax.random.uniform(k_b, (1, 4 * hidden_size),
                           minval=-bound, maxval=bound, dtype=dtype)
    return w_cat[:input_size], w_cat[input_size:], b


if __name__ == "__main__":
    def run_case(key, batch, input_size, hidden_size):
        k_p, k_x, k_h, k_c = jax.random.split(key, 4)
        wx, wh, b = init_params(k_p, input_size, hidden_size)
        x = jax.random.normal(k_x, (batch, input_size), dtype=jnp.float32)
        h0 = jax.random.normal(k_h, (batch, hidden_size), dtype=jnp.float32)
        c0 = jax.random.normal(k_c, (batch, hidden_size), dtype=jnp.float32)

        # One-time weight pack (f32 matmul path for parity with PyTorch;
        # pass matmul_dtype=jnp.bfloat16 to halve weight/activation DMA).
        wcat_p, b_p, cfg = pack_params(wx, wh, b, matmul_dtype=jnp.float32)

        h, c = lstm_cell(x, h0, c0, wcat_p, b_p, cfg=cfg)
        jax.block_until_ready((h, c))

        h_ref, c_ref = lstm_cell_ref(x, h0, c0, wx, wh, b)
        assert h.shape == (batch, hidden_size)
        assert c.shape == (batch, hidden_size)
        assert jnp.allclose(h, h_ref, atol=1e-2, rtol=1e-2)
        assert jnp.allclose(c, c_ref, atol=1e-2, rtol=1e-2)

    key = jax.random.PRNGKey(0)
    k1, k2 = jax.random.split(key)
    run_case(k1, batch=8, input_size=16, hidden_size=32)    # single hidden chunk
    run_case(k2, batch=8, input_size=48, hidden_size=320)   # multi-chunk path
    print("KERNEL_OK")
</pallas_src>

<mosaic_0001>
module attributes {stable_mosaic.version = 11 : i64} {
  func.func @lstm_cell_kernel(%arg0: i32, %arg1: i32, %arg2: memref<8x256xf32, #tpu.memory_space<vmem>>, %arg3: memref<8x128xf32, #tpu.memory_space<vmem>>, %arg4: memref<256x512xf32, #tpu.memory_space<vmem>>, %arg5: memref<1x512xf32, #tpu.memory_space<vmem>>, %arg6: memref<8x128xf32, #tpu.memory_space<vmem>>, %arg7: memref<8x128xf32, #tpu.memory_space<vmem>>) attributes {dimension_semantics = [#tpu.dimension_semantics<parallel>, #tpu.dimension_semantics<parallel>], iteration_bounds = array<i64: 1, 1>, scalar_prefetch = 0 : i64, scratch_operands = 0 : i64, tpu.core_type = #tpu.core_type<tc>, window_params = [{transform_indices = @transform_0, window_bounds = array<i64: 8, 256>}, {transform_indices = @transform_1, window_bounds = array<i64: 8, 128>}, {transform_indices = @transform_2, window_bounds = array<i64: 256, 512>}, {transform_indices = @transform_3, window_bounds = array<i64: 1, 512>}, {transform_indices = @transform_4, window_bounds = array<i64: 8, 128>}, {transform_indices = @transform_5, window_bounds = array<i64: 8, 128>}]} {
    %c0 = arith.constant 0 : index
    %c0_0 = arith.constant 0 : index
    %0 = vector.load %arg2[%c0, %c0_0] : memref<8x256xf32, #tpu.memory_space<vmem>>, vector<8x256xf32>
    %c0_1 = arith.constant 0 : index
    %c0_2 = arith.constant 0 : index
    %1 = vector.load %arg4[%c0_1, %c0_2] : memref<256x512xf32, #tpu.memory_space<vmem>>, vector<256x512xf32>
    %cst = arith.constant dense<0.000000e+00> : vector<8x512xf32>
    %2 = tpu.matmul %0, %1, %cst {dimension_numbers = #tpu.dot_dimension_numbers<[1], [0], [0], [1], [0, 0, 1, 1], [], []>} : vector<8x256xf32>, vector<256x512xf32>, vector<8x512xf32> -> vector<8x512xf32>
    %c0_3 = arith.constant 0 : index
    %c0_4 = arith.constant 0 : index
    %3 = vector.load %arg5[%c0_3, %c0_4] : memref<1x512xf32, #tpu.memory_space<vmem>>, vector<1x512xf32>
    %4 = vector.broadcast %3 : vector<1x512xf32> to vector<8x512xf32>
    %5 = arith.addf %2, %4 : vector<8x512xf32>
    %6 = vector.extract_strided_slice %5 {offsets = [0, 0], sizes = [8, 384], strides = [1, 1]} : vector<8x512xf32> to vector<8x384xf32>
    %cst_5 = arith.constant 5.000000e-01 : f32
    %7 = vector.broadcast %cst_5 : f32 to vector<8x384xf32>
    %8 = arith.mulf %7, %6 : vector<8x384xf32>
    %9 = math.tanh %8 : vector<8x384xf32>
    %cst_6 = arith.constant 5.000000e-01 : f32
    %10 = vector.broadcast %cst_6 : f32 to vector<8x384xf32>
    %11 = arith.mulf %10, %9 : vector<8x384xf32>
    %cst_7 = arith.constant 5.000000e-01 : f32
    %12 = vector.broadcast %cst_7 : f32 to vector<8x384xf32>
    %13 = arith.addf %11, %12 : vector<8x384xf32>
    %14 = vector.extract_strided_slice %13 {offsets = [0, 0], sizes = [8, 128], strides = [1, 1]} : vector<8x384xf32> to vector<8x128xf32>
    %15 = vector.extract_strided_slice %13 {offsets = [0, 128], sizes = [8, 128], strides = [1, 1]} : vector<8x384xf32> to vector<8x128xf32>
    %16 = vector.extract_strided_slice %13 {offsets = [0, 256], sizes = [8, 128], strides = [1, 1]} : vector<8x384xf32> to vector<8x128xf32>
    %17 = vector.extract_strided_slice %5 {offsets = [0, 384], sizes = [8, 128], strides = [1, 1]} : vector<8x512xf32> to vector<8x128xf32>
    %18 = math.tanh %17 : vector<8x128xf32>
    %c0_8 = arith.constant 0 : index
    %c0_9 = arith.constant 0 : index
    %19 = vector.load %arg3[%c0_8, %c0_9] : memref<8x128xf32, #tpu.memory_space<vmem>>, vector<8x128xf32>
    %20 = arith.mulf %15, %19 : vector<8x128xf32>
    %21 = arith.mulf %14, %18 : vector<8x128xf32>
    %22 = arith.addf %20, %21 : vector<8x128xf32>
    %23 = math.tanh %22 : vector<8x128xf32>
    %24 = arith.mulf %16, %23 : vector<8x128xf32>
    %c0_10 = arith.constant 0 : index
    %c0_11 = arith.constant 0 : index
    %25 = vector.load %arg6[%c0_10, %c0_11] : memref<8x128xf32, #tpu.memory_space<vmem>>, vector<8x128xf32>
    tpu.vector_store %arg6[%c0_10, %c0_11], %24 {strides = array<i32>} : memref<8x128xf32, #tpu.memory_space<vmem>>, vector<8x128xf32>,
    %c0_12 = arith.constant 0 : index
    %c0_13 = arith.constant 0 : index
    %26 = vector.load %arg7[%c0_12, %c0_13] : memref<8x128xf32, #tpu.memory_space<vmem>>, vector<8x128xf32>
    tpu.vector_store %arg7[%c0_12, %c0_13], %22 {strides = array<i32>} : memref<8x128xf32, #tpu.memory_space<vmem>>, vector<8x128xf32>,
    return
  }
  func.func @transform_0(%arg0: i32, %arg1: i32) -> (i32, i32) {
    %c0_i32 = arith.constant 0 : i32
    %c0_i32_0 = arith.constant 0 : i32
    return %arg1, %c0_i32 : i32, i32
  }
  func.func @transform_1(%arg0: i32, %arg1: i32) -> (i32, i32) {
    %c0_i32 = arith.constant 0 : i32
    return %arg1, %arg0 : i32, i32
  }
  func.func @transform_2(%arg0: i32, %arg1: i32) -> (i32, i32) {
    %c0_i32 = arith.constant 0 : i32
    %c0_i32_0 = arith.constant 0 : i32
    return %c0_i32, %arg0 : i32, i32
  }
  func.func @transform_3(%arg0: i32, %arg1: i32) -> (i32, i32) {
    %c0_i32 = arith.constant 0 : i32
    %c0_i32_0 = arith.constant 0 : i32
    return %c0_i32, %arg0 : i32, i32
  }
  func.func @transform_4(%arg0: i32, %arg1: i32) -> (i32, i32) {
    %c0_i32 = arith.constant 0 : i32
    return %arg1, %arg0 : i32, i32
  }
  func.func @transform_5(%arg0: i32, %arg1: i32) -> (i32, i32) {
    %c0_i32 = arith.constant 0 : i32
    return %arg1, %arg0 : i32, i32
  }
}

</mosaic_0001>

<llo_original>
// kernel: lstm_cell.1
$region0: #{lstm_cell.1}
  #allocation0 [shape = 'u32[]', space=smem, size = 0x4, offset = 0x4, fixed_abs, tag = 'smem constant byte address 0x4 - core index']
  #allocation1 [shape = 'u32[72,128]{1,0:T(1,128)}', space=vmem, size = 0x9000, scoped, tag = 'internal scratch']
  %s0 = inlined_call_operand.vmem [shape: f32[8,256], index: 0, kind: input, shape index: {}]
  %s1 = inlined_call_operand.vmem [shape: f32[8,128], index: 1, kind: input, shape index: {}, may-alias: {1,5}]
  %s2 = inlined_call_operand.hbm [shape: f32[256,512], index: 2, kind: input, shape index: {}]
  %s3 = inlined_call_operand.vmem [shape: f32[1,512], index: 3, kind: input, shape index: {}]
  %s4 = inlined_call_operand.hbm [shape: f32[8,128], index: 4, kind: output, shape index: {0}]
  %s5 = inlined_call_operand.vmem [shape: f32[8,128], index: 5, kind: output, shape index: {1}, may-alias: {1,5}]
  %6 = xla_tuple %s4, %s5
  %s7 = sld [smem:[#allocation0]]
  $region38: #{lstm_cell.1} parent=0
    _
  %s9 = ssub.s32 1, %s7
  %s10 = scalar_select 0, %s9, %s7
  $region1: #{lstm_cell.1} parent=0
    #allocation2 [shape = 'u8[524288]{0}', space=vmem, size = 0x80000, scoped, tag = 'input window, operand 2, single buffered']
    #allocation3 [shape = 's32[1]{0}', space=sflag, size = 0x4, scoped, tag = 'scoped memory for lstm_cell.1']
    #allocation4 [shape = 's32[1]{0}', space=sflag, size = 0x4, scoped, tag = 'scoped memory for lstm_cell.1']
    #allocation5 [shape = 'u8[4096]{0}', space=vmem, size = 0x1000, scoped, tag = 'output window, operand 0, single buffered']
    %11 = vsyncpa [#allocation3], 0
    %12 = vsyncpa [#allocation4], 0
    // Predicated region
    $region2: #{lstm_cell.1} parent=1 // pred_check
      _
    $region3: #{lstm_cell.1} parent=1 // pred_check_branch
      %14 = sbr.rel (0) target = $region5
    $region4: #{lstm_cell.1} parent=1 // pred_region
      _
    $region5: #{lstm_cell.1} parent=1 // pred_fallthru
      _
    // Predicated region
    $region6: #{lstm_cell.1} parent=1 // pred_check
      _
    $region7: #{lstm_cell.1} parent=1 // pred_check_branch
      %16 = sbr.rel (0) target = $region9
    $region8: #{lstm_cell.1} parent=1 // pred_region
      _
    $region9: #{lstm_cell.1} parent=1 // pred_fallthru
      _
    // Predicated region
    $region10: #{lstm_cell.1} parent=1 // pred_check
      _
    $region11: #{lstm_cell.1} parent=1 // pred_check_branch
      %18 = sbr.rel (0) target = $region13
    $region12: #{lstm_cell.1} parent=1 // pred_region
      %20 = vsyncadd [#allocation3], 0
      %s21 = sshll.u32 %s2, 4
      %s22 = int_to_ptr.hbm [resolvable:$true] %s21
      %s23 = sshll.u32 [#allocation2], 4
      %s24 = int_to_ptr.vmem [resolvable:$true] %s23
      %29 = dma.hbm_to_vmem [thread:$0]  %s22, 16384, %s24, [#allocation3], 512, 512, 32
    $region13: #{lstm_cell.1} parent=1 // pred_fallthru
      _
    // Predicated region
    $region14: #{lstm_cell.1} parent=1 // pred_check
      _
    $region15: #{lstm_cell.1} parent=1 // pred_check_branch
      %31 = sbr.rel (0) target = $region17
    $region16: #{lstm_cell.1} parent=1 // pred_region
      _
    $region17: #{lstm_cell.1} parent=1 // pred_fallthru
      _
    // Predicated region
    $region18: #{lstm_cell.1} parent=1 // pred_check
      _
    $region19: #{lstm_cell.1} parent=1 // pred_check_branch
      %33 = sbr.rel (0) target = $region21
    $region20: #{lstm_cell.1} parent=1 // pred_region
      %35 = dma.done [#allocation3], 16384
    $region21: #{lstm_cell.1} parent=1 // pred_fallthru
      _
    %v36 = vld [vmem:[%s0] sm:$0xff]
    %v37 = vld [vmem:[%s0 + $0x8] sm:$0xff]
    %v38 = vld [vmem:[#allocation2] sm:$0xff]
    %v39 = vld [vmem:[#allocation2 + $0x8] sm:$0xff]
    %v40 = vld [vmem:[#allocation2 + $0x10] sm:$0xff]
    %v41 = vld [vmem:[#allocation2 + $0x18] sm:$0xff]
    %v42 = vld [vmem:[#allocation2 + $0x20] sm:$0xff]
    %v43 = vld [vmem:[#allocation2 + $0x28] sm:$0xff]
    %v44 = vld [vmem:[#allocation2 + $0x30] sm:$0xff]
    %v45 = vld [vmem:[#allocation2 + $0x38] sm:$0xff]
    %v46 = vld [vmem:[#allocation2 + $0x40] sm:$0xff]
    %v47 = vld [vmem:[#allocation2 + $0x48] sm:$0xff]
    %v48 = vld [vmem:[#allocation2 + $0x50] sm:$0xff]
    %v49 = vld [vmem:[#allocation2 + $0x58] sm:$0xff]
    %v50 = vld [vmem:[#allocation2 + $0x60] sm:$0xff]
    %v51 = vld [vmem:[#allocation2 + $0x68] sm:$0xff]
    %v52 = vld [vmem:[#allocation2 + $0x70] sm:$0xff]
    %v53 = vld [vmem:[#allocation2 + $0x78] sm:$0xff]
    %v54 = vld [vmem:[#allocation2 + $0x80] sm:$0xff]
    %v55 = vld [vmem:[#allocation2 + $0x88] sm:$0xff]
    %v56 = vld [vmem:[#allocation2 + $0x90] sm:$0xff]
    %v57 = vld [vmem:[#allocation2 + $0x98] sm:$0xff]
    %v58 = vld [vmem:[#allocation2 + $0xa0] sm:$0xff]
    %v59 = vld [vmem:[#allocation2 + $0xa8] sm:$0xff]
    %v60 = vld [vmem:[#allocation2 + $0xb0] sm:$0xff]
    %v61 = vld [vmem:[#allocation2 + $0xb8] sm:$0xff]
    %v62 = vld [vmem:[#allocation2 + $0xc0] sm:$0xff]
    %v63 = vld [vmem:[#allocation2 + $0xc8] sm:$0xff]
    %v64 = vld [vmem:[#allocation2 + $0xd0] sm:$0xff]
    %v65 = vld [vmem:[#allocation2 + $0xd8] sm:$0xff]
    %v66 = vld [vmem:[#allocation2 + $0xe0] sm:$0xff]
    %v67 = vld [vmem:[#allocation2 + $0xe8] sm:$0xff]
    %v68 = vld [vmem:[#allocation2 + $0xf0] sm:$0xff]
    %v69 = vld [vmem:[#allocation2 + $0xf8] sm:$0xff]
    %v70 = vld [vmem:[#allocation2 + $0x100] sm:$0xff]
    %v71 = vld [vmem:[#allocation2 + $0x108] sm:$0xff]
    %v72 = vld [vmem:[#allocation2 + $0x110] sm:$0xff]
    %v73 = vld [vmem:[#allocation2 + $0x118] sm:$0xff]
    %v74 = vld [vmem:[#allocation2 + $0x120] sm:$0xff]
    %v75 = vld [vmem:[#allocation2 + $0x128] sm:$0xff]
    %v76 = vld [vmem:[#allocation2 + $0x130] sm:$0xff]
    %v77 = vld [vmem:[#allocation2 + $0x138] sm:$0xff]
    %v78 = vld [vmem:[#allocation2 + $0x140] sm:$0xff]
    %v79 = vld [vmem:[#allocation2 + $0x148] sm:$0xff]
    %v80 = vld [vmem:[#allocation2 + $0x150] sm:$0xff]
    %v81 = vld [vmem:[#allocation2 + $0x158] sm:$0xff]
    %v82 = vld [vmem:[#allocation2 + $0x160] sm:$0xff]
    %v83 = vld [vmem:[#allocation2 + $0x168] sm:$0xff]
    %v84 = vld [vmem:[#allocation2 + $0x170] sm:$0xff]
    %v85 = vld [vmem:[#allocation2 + $0x178] sm:$0xff]
    %v86 = vld [vmem:[#allocation2 + $0x180] sm:$0xff]
    %v87 = vld [vmem:[#allocation2 + $0x188] sm:$0xff]
    %v88 = vld [vmem:[#allocation2 + $0x190] sm:$0xff]
    %v89 = vld [vmem:[#allocation2 + $0x198] sm:$0xff]
    %v90 = vld [vmem:[#allocation2 + $0x1a0] sm:$0xff]
    %v91 = vld [vmem:[#allocation2 + $0x1a8] sm:$0xff]
    %v92 = vld [vmem:[#allocation2 + $0x1b0] sm:$0xff]
    %v93 = vld [vmem:[#allocation2 + $0x1b8] sm:$0xff]
    %v94 = vld [vmem:[#allocation2 + $0x1c0] sm:$0xff]
    %v95 = vld [vmem:[#allocation2 + $0x1c8] sm:$0xff]
    %v96 = vld [vmem:[#allocation2 + $0x1d0] sm:$0xff]
    %v97 = vld [vmem:[#allocation2 + $0x1d8] sm:$0xff]
    %v98 = vld [vmem:[#allocation2 + $0x1e0] sm:$0xff]
    %v99 = vld [vmem:[#allocation2 + $0x1e8] sm:$0xff]
    %v100 = vld [vmem:[#allocation2 + $0x1f0] sm:$0xff]
    %v101 = vld [vmem:[#allocation2 + $0x1f8] sm:$0xff]
    %v102 = vld [vmem:[#allocation2 + $0x200] sm:$0xff]
    %v103 = vld [vmem:[#allocation2 + $0x208] sm:$0xff]
    %v104 = vld [vmem:[#allocation2 + $0x210] sm:$0xff]
    %v105 = vld [vmem:[#allocation2 + $0x218] sm:$0xff]
    %v106 = vld [vmem:[#allocation2 + $0x220] sm:$0xff]
    %v107 = vld [vmem:[#allocation2 + $0x228] sm:$0xff]
    %v108 = vld [vmem:[#allocation2 + $0x230] sm:$0xff]
    %v109 = vld [vmem:[#allocation2 + $0x238] sm:$0xff]
    %v110 = vld [vmem:[#allocation2 + $0x240] sm:$0xff]
    %v111 = vld [vmem:[#allocation2 + $0x248] sm:$0xff]
    %v112 = vld [vmem:[#allocation2 + $0x250] sm:$0xff]
    %v113 = vld [vmem:[#allocation2 + $0x258] sm:$0xff]
    %v114 = vld [vmem:[#allocation2 + $0x260] sm:$0xff]
    %v115 = vld [vmem:[#allocation2 + $0x268] sm:$0xff]
    %v116 = vld [vmem:[#allocation2 + $0x270] sm:$0xff]
    %v117 = vld [vmem:[#allocation2 + $0x278] sm:$0xff]
    %v118 = vld [vmem:[#allocation2 + $0x280] sm:$0xff]
    %v119 = vld [vmem:[#allocation2 + $0x288] sm:$0xff]
    %v120 = vld [vmem:[#allocation2 + $0x290] sm:$0xff]
    %v121 = vld [vmem:[#allocation2 + $0x298] sm:$0xff]
    %v122 = vld [vmem:[#allocation2 + $0x2a0] sm:$0xff]
    %v123 = vld [vmem:[#allocation2 + $0x2a8] sm:$0xff]
    %v124 = vld [vmem:[#allocation2 + $0x2b0] sm:$0xff]
    %v125 = vld [vmem:[#allocation2 + $0x2b8] sm:$0xff]
    %v126 = vld [vmem:[#allocation2 + $0x2c0] sm:$0xff]
    %v127 = vld [vmem:[#allocation2 + $0x2c8] sm:$0xff]
    %v128 = vld [vmem:[#allocation2 + $0x2d0] sm:$0xff]
    %v129 = vld [vmem:[#allocation2 + $0x2d8] sm:$0xff]
    %v130 = vld [vmem:[#allocation2 + $0x2e0] sm:$0xff]
    %v131 = vld [vmem:[#allocation2 + $0x2e8] sm:$0xff]
    %v132 = vld [vmem:[#allocation2 + $0x2f0] sm:$0xff]
    %v133 = vld [vmem:[#allocation2 + $0x2f8] sm:$0xff]
    %v134 = vld [vmem:[#allocation2 + $0x300] sm:$0xff]
    %v135 = vld [vmem:[#allocation2 + $0x308] sm:$0xff]
    %v136 = vld [vmem:[#allocation2 + $0x310] sm:$0xff]
    %v137 = vld [vmem:[#allocation2 + $0x318] sm:$0xff]
    %v138 = vld [vmem:[#allocation2 + $0x320] sm:$0xff]
    %v139 = vld [vmem:[#allocation2 + $0x328] sm:$0xff]
    %v140 = vld [vmem:[#allocation2 + $0x330] sm:$0xff]
    %v141 = vld [vmem:[#allocation2 + $0x338] sm:$0xff]
    %v142 = vld [vmem:[#allocation2 + $0x340] sm:$0xff]
    %v143 = vld [vmem:[#allocation2 + $0x348] sm:$0xff]
    %v144 = vld [vmem:[#allocation2 + $0x350] sm:$0xff]
    %v145 = vld [vmem:[#allocation2 + $0x358] sm:$0xff]
    %v146 = vld [vmem:[#allocation2 + $0x360] sm:$0xff]
    %v147 = vld [vmem:[#allocation2 + $0x368] sm:$0xff]
    %v148 = vld [vmem:[#allocation2 + $0x370] sm:$0xff]
    %v149 = vld [vmem:[#allocation2 + $0x378] sm:$0xff]
    %v150 = vld [vmem:[#allocation2 + $0x380] sm:$0xff]
    %v151 = vld [vmem:[#allocation2 + $0x388] sm:$0xff]
    %v152 = vld [vmem:[#allocation2 + $0x390] sm:$0xff]
    %v153 = vld [vmem:[#allocation2 + $0x398] sm:$0xff]
    %v154 = vld [vmem:[#allocation2 + $0x3a0] sm:$0xff]
    %v155 = vld [vmem:[#allocation2 + $0x3a8] sm:$0xff]
    %v156 = vld [vmem:[#allocation2 + $0x3b0] sm:$0xff]
    %v157 = vld [vmem:[#allocation2 + $0x3b8] sm:$0xff]
    %v158 = vld [vmem:[#allocation2 + $0x3c0] sm:$0xff]
    %v159 = vld [vmem:[#allocation2 + $0x3c8] sm:$0xff]
    %v160 = vld [vmem:[#allocation2 + $0x3d0] sm:$0xff]
    %v161 = vld [vmem:[#allocation2 + $0x3d8] sm:$0xff]
    %v162 = vld [vmem:[#allocation2 + $0x3e0] sm:$0xff]
    %v163 = vld [vmem:[#allocation2 + $0x3e8] sm:$0xff]
    %v164 = vld [vmem:[#allocation2 + $0x3f0] sm:$0xff]
    %v165 = vld [vmem:[#allocation2 + $0x3f8] sm:$0xff]
    %v166 = vld [vmem:[%s3] sm:$0xf]
    %v168 = vperm.slane %v166, 0
    %v169 = vperm.slane %v166, 1
    %v170 = vperm.slane %v166, 2
    %v171 = vperm.slane %v166, 3
    %176 = vmatpush.msra.mxu0 %v98
    %177 = vmatpush.msra.mxu0 %v94
    %178 = vmatpush.msra.mxu0 %v90
    %179 = vmatpush.msra.mxu0 %v86
    %180 = vmatpush.msra.mxu0 %v82
    %181 = vmatpush.msra.mxu0 %v78
    %182 = vmatpush.msra.mxu0 %v74
    %183 = vmatpush.msra.mxu0 %v70
    %184 = vmatpush.msra.mxu0 %v66
    %185 = vmatpush.msra.mxu0 %v62
    %186 = vmatpush.msra.mxu0 %v58
    %187 = vmatpush.msra.mxu0 %v54
    %188 = vmatpush.msra.mxu0 %v50
    %189 = vmatpush.msra.mxu0 %v46
    %190 = vmatpush.msra.mxu0 %v42
    %191 = vmatpush.msra.mxu0 %v38
    %192 = vmatmul.f32.gmra.mxu0 %v36
    %v193 = vpop.f32.mrf.mxu0
    %v194 = vadd.f32 %v168, %v193
    %195 = vdwg.mxu0
    %196 = vmatpush.msra.mxu0 %v162
    %197 = vmatpush.msra.mxu0 %v158
    %198 = vmatpush.msra.mxu0 %v154
    %199 = vmatpush.msra.mxu0 %v150
    %200 = vmatpush.msra.mxu0 %v146
    %201 = vmatpush.msra.mxu0 %v142
    %202 = vmatpush.msra.mxu0 %v138
    %203 = vmatpush.msra.mxu0 %v134
    %204 = vmatpush.msra.mxu0 %v130
    %205 = vmatpush.msra.mxu0 %v126
    %206 = vmatpush.msra.mxu0 %v122
    %207 = vmatpush.msra.mxu0 %v118
    %208 = vmatpush.msra.mxu0 %v114
    %209 = vmatpush.msra.mxu0 %v110
    %210 = vmatpush.msra.mxu0 %v106
    %211 = vmatpush.msra.mxu0 %v102
    %212 = vmatmul.f32.gmra.mxu0 %v37
    %v213 = vpop.f32.mrf.mxu0
    %v214 = vadd.f32 %v194, %v213
    %215 = vdwg.mxu0
    %216 = vmatpush.msra.mxu0 %v99
    %217 = vmatpush.msra.mxu0 %v95
    %218 = vmatpush.msra.mxu0 %v91
    %219 = vmatpush.msra.mxu0 %v87
    %220 = vmatpush.msra.mxu0 %v83
    %221 = vmatpush.msra.mxu0 %v79
    %222 = vmatpush.msra.mxu0 %v75
    %223 = vmatpush.msra.mxu0 %v71
    %224 = vmatpush.msra.mxu0 %v67
    %225 = vmatpush.msra.mxu0 %v63
    %226 = vmatpush.msra.mxu0 %v59
    %227 = vmatpush.msra.mxu0 %v55
    %228 = vmatpush.msra.mxu0 %v51
    %229 = vmatpush.msra.mxu0 %v47
    %230 = vmatpush.msra.mxu0 %v43
    %231 = vmatpush.msra.mxu0 %v39
    %232 = vmatmul.f32.gmra.mxu0 %v36
    %v233 = vpop.f32.mrf.mxu0
    %v234 = vadd.f32 %v169, %v233
    %235 = vdwg.mxu0
    %236 = vmatpush.msra.mxu0 %v163
    %237 = vmatpush.msra.mxu0 %v159
    %238 = vmatpush.msra.mxu0 %v155
    %239 = vmatpush.msra.mxu0 %v151
    %240 = vmatpush.msra.mxu0 %v147
    %241 = vmatpush.msra.mxu0 %v143
    %242 = vmatpush.msra.mxu0 %v139
    %243 = vmatpush.msra.mxu0 %v135
    %244 = vmatpush.msra.mxu0 %v131
    %245 = vmatpush.msra.mxu0 %v127
    %246 = vmatpush.msra.mxu0 %v123
    %247 = vmatpush.msra.mxu0 %v119
    %248 = vmatpush.msra.mxu0 %v115
    %249 = vmatpush.msra.mxu0 %v111
    %250 = vmatpush.msra.mxu0 %v107
    %251 = vmatpush.msra.mxu0 %v103
    %252 = vmatmul.f32.gmra.mxu0 %v37
    %v253 = vpop.f32.mrf.mxu0
    %v254 = vadd.f32 %v234, %v253
    %255 = vdwg.mxu0
    %256 = vmatpush.msra.mxu0 %v100
    %257 = vmatpush.msra.mxu0 %v96
    %258 = vmatpush.msra.mxu0 %v92
    %259 = vmatpush.msra.mxu0 %v88
    %260 = vmatpush.msra.mxu0 %v84
    %261 = vmatpush.msra.mxu0 %v80
    %262 = vmatpush.msra.mxu0 %v76
    %263 = vmatpush.msra.mxu0 %v72
    %264 = vmatpush.msra.mxu0 %v68
    %265 = vmatpush.msra.mxu0 %v64
    %266 = vmatpush.msra.mxu0 %v60
    %267 = vmatpush.msra.mxu0 %v56
    %268 = vmatpush.msra.mxu0 %v52
    %269 = vmatpush.msra.mxu0 %v48
    %270 = vmatpush.msra.mxu0 %v44
    %271 = vmatpush.msra.mxu0 %v40
    %272 = vmatmul.f32.gmra.mxu0 %v36
    %v273 = vpop.f32.mrf.mxu0
    %v274 = vadd.f32 %v170, %v273
    %275 = vdwg.mxu0
    %276 = vmatpush.msra.mxu0 %v164
    %277 = vmatpush.msra.mxu0 %v160
    %278 = vmatpush.msra.mxu0 %v156
    %279 = vmatpush.msra.mxu0 %v152
    %280 = vmatpush.msra.mxu0 %v148
    %281 = vmatpush.msra.mxu0 %v144
    %282 = vmatpush.msra.mxu0 %v140
    %283 = vmatpush.msra.mxu0 %v136
    %284 = vmatpush.msra.mxu0 %v132
    %285 = vmatpush.msra.mxu0 %v128
    %286 = vmatpush.msra.mxu0 %v124
    %287 = vmatpush.msra.mxu0 %v120
    %288 = vmatpush.msra.mxu0 %v116
    %289 = vmatpush.msra.mxu0 %v112
    %290 = vmatpush.msra.mxu0 %v108
    %291 = vmatpush.msra.mxu0 %v104
    %292 = vmatmul.f32.gmra.mxu0 %v37
    %v293 = vpop.f32.mrf.mxu0
    %v294 = vadd.f32 %v274, %v293
    %295 = vdwg.mxu0
    %296 = vmatpush.msra.mxu0 %v101
    %297 = vmatpush.msra.mxu0 %v97
    %298 = vmatpush.msra.mxu0 %v93
    %299 = vmatpush.msra.mxu0 %v89
    %300 = vmatpush.msra.mxu0 %v85
    %301 = vmatpush.msra.mxu0 %v81
    %302 = vmatpush.msra.mxu0 %v77
    %303 = vmatpush.msra.mxu0 %v73
    %304 = vmatpush.msra.mxu0 %v69
    %305 = vmatpush.msra.mxu0 %v65
    %306 = vmatpush.msra.mxu0 %v61
    %307 = vmatpush.msra.mxu0 %v57
    %308 = vmatpush.msra.mxu0 %v53
    %309 = vmatpush.msra.mxu0 %v49
    %310 = vmatpush.msra.mxu0 %v45
    %311 = vmatpush.msra.mxu0 %v41
    %312 = vmatmul.f32.gmra.mxu0 %v36
    %v313 = vpop.f32.mrf.mxu0
    %v314 = vadd.f32 %v171, %v313
    %315 = vdwg.mxu0
    %316 = vmatpush.msra.mxu0 %v165
    %317 = vmatpush.msra.mxu0 %v161
    %318 = vmatpush.msra.mxu0 %v157
    %319 = vmatpush.msra.mxu0 %v153
    %320 = vmatpush.msra.mxu0 %v149
    %321 = vmatpush.msra.mxu0 %v145
    %322 = vmatpush.msra.mxu0 %v141
    %323 = vmatpush.msra.mxu0 %v137
    %324 = vmatpush.msra.mxu0 %v133
    %325 = vmatpush.msra.mxu0 %v129
    %326 = vmatpush.msra.mxu0 %v125
    %327 = vmatpush.msra.mxu0 %v121
    %328 = vmatpush.msra.mxu0 %v117
    %329 = vmatpush.msra.mxu0 %v113
    %330 = vmatpush.msra.mxu0 %v109
    %331 = vmatpush.msra.mxu0 %v105
    %332 = vmatmul.f32.gmra.mxu0 %v37
    %v333 = vpop.f32.mrf.mxu0
    %v334 = vadd.f32 %v314, %v333
    %335 = vdwg.mxu0
    %v336 = vmul.f32 %v214, 0.5
    %v337 = vmul.f32 %v254, 0.5
    %v338 = vmul.f32 %v294, 0.5
    %v339 = vtanh.pop %v336
    %v340 = vtanh.pop %v337
    %v341 = vtanh.pop %v338
    %v342 = vmul.f32 %v339, 0.5
    %v343 = vmul.f32 %v340, 0.5
    %v344 = vmul.f32 %v341, 0.5
    %v345 = vadd.f32 %v342, 0.5
    %v346 = vadd.f32 %v343, 0.5
    %v347 = vadd.f32 %v344, 0.5
    %v348 = vtanh.pop %v334
    %v349 = vld [vmem:[%s1] sm:$0xff]
    %v350 = vmul.f32 %v346, %v349
    %v351 = vmul.f32 %v345, %v348
    %v352 = vadd.f32 %v350, %v351
    %v353 = vtanh.pop %v352
    %v354 = vmul.f32 %v347, %v353
    %355 = vst [vmem:[#allocation5] sm:$0xff] %v354
    %356 = vst [vmem:[%s5] sm:$0xff] %v352
    // Predicated region
    $region22: #{lstm_cell.1} parent=1 // pred_check
      _
    $region23: #{lstm_cell.1} parent=1 // pred_check_branch
      %358 = sbr.rel (0) target = $region25
    $region24: #{lstm_cell.1} parent=1 // pred_region
      %360 = vsyncadd [#allocation4], 0
      %s362 = sshll.u32 [#allocation5], 4
      %s363 = int_to_ptr.vmem [resolvable:$true] %s362
      %s364 = sshll.u32 %s4, 4
      %s365 = int_to_ptr.hbm [resolvable:$true] %s364
      %367 = dma.vmem_to_hbm [thread:$0]  %s363, 128, %s365, [#allocation4]
    $region25: #{lstm_cell.1} parent=1 // pred_fallthru
      _
    // Predicated region
    $region26: #{lstm_cell.1} parent=1 // pred_check
      _
    $region27: #{lstm_cell.1} parent=1 // pred_check_branch
      %369 = sbr.rel (0) target = $region29
    $region28: #{lstm_cell.1} parent=1 // pred_region
      _
    $region29: #{lstm_cell.1} parent=1 // pred_fallthru
      _
    // Predicated region
    $region30: #{lstm_cell.1} parent=1 // pred_check
      _
    $region31: #{lstm_cell.1} parent=1 // pred_check_branch
      %371 = sbr.rel (0) target = $region33
    $region32: #{lstm_cell.1} parent=1 // pred_region
      %373 = dma.done [#allocation4], 128
    $region33: #{lstm_cell.1} parent=1 // pred_fallthru
      _
    // Predicated region
    $region34: #{lstm_cell.1} parent=1 // pred_check
      _
    $region35: #{lstm_cell.1} parent=1 // pred_check_branch
      %375 = sbr.rel (0) target = $region37
    $region36: #{lstm_cell.1} parent=1 // pred_region
      _
    $region37: #{lstm_cell.1} parent=1 // pred_fallthru
      _
    %376 = vsyncpa [#allocation3], 1
    %377 = vsyncpa [#allocation4], 1

</llo_original>
